<compile_context>
chip_gen: v7x
topology: tpu7x:2x2x1
jax: 0.10.0
libtpu: 0.0.40
codegen_flags: <defaults>
</compile_context>

<pallas_src>
import functools

import jax
import jax.numpy as jnp
from jax import lax
from jax.experimental import pallas as pl
from jax.experimental.pallas import tpu as pltpu


def _mlp_kernel(x_ref, w1_ref, b1_ref, w2_ref, b2_ref, w3_ref, b3_ref, o_ref):
    # Cast the streamed activation tile to bf16 in-kernel (no separate HBM cast pass);
    # if the caller already supplies bf16 x this is a no-op.
    x_bf = x_ref[...].astype(jnp.bfloat16)

    # fc1: bf16 MXU matmul, f32 accumulation; bias + relu in f32 on the VPU.
    h1 = jnp.dot(x_bf, w1_ref[...], preferred_element_type=jnp.float32)
    h1 = jnp.maximum(h1 + b1_ref[...], 0.0)

    # fc2: activations back to bf16 for the MXU, accumulate in f32.
    h2 = jnp.dot(h1.astype(w2_ref.dtype), w2_ref[...],
                 preferred_element_type=jnp.float32)
    h2 = jnp.maximum(h2 + b2_ref[...], 0.0)

    # out: N=1 head as a lane-dense (1, block_b) row: w3_row (1, n2) contracted with
    # h2 (block_b, n2) on n2. b3 is a scalar living in SMEM.
    z = lax.dot_general(w3_ref[...], h2, (((1,), (1,)), ((), ())),
                        preferred_element_type=jnp.float32) + b3_ref[0, 0]

    # Exact sigmoid: exp on the EUP, one precise divide over a single row (essentially free).
    o_ref[...] = (1.0 / (1.0 + jnp.exp(-z))).astype(o_ref.dtype)


def _mlp_pallas(x, w1_bf, b1, w2_bf, b2, w3_row, b3_s, block_b, vmem_limit_bytes):
    """Runs the fused MLP on x whose row count is an exact multiple of block_b."""
    n_rows, inp_dim = x.shape
    n1 = w1_bf.shape[1]
    n2 = w2_bf.shape[1]
    grid_b = n_rows // block_b

    out = pl.pallas_call(
        _mlp_kernel,
        out_shape=jax.ShapeDtypeStruct((grid_b, 1, block_b), jnp.float32),
        grid_spec=pltpu.PrefetchScalarGridSpec(
            num_scalar_prefetch=0,
            grid=(grid_b,),
            in_specs=[
                pl.BlockSpec((block_b, inp_dim), lambda i: (i, 0)),  # x tile (streamed)
                pl.BlockSpec((inp_dim, n1), lambda i: (0, 0)),       # w1 (VMEM resident)
                pl.BlockSpec((1, n1), lambda i: (0, 0)),             # b1
                pl.BlockSpec((n1, n2), lambda i: (0, 0)),            # w2
                pl.BlockSpec((1, n2), lambda i: (0, 0)),             # b2
                pl.BlockSpec((1, n2), lambda i: (0, 0)),             # w3 as a lane row
                pl.BlockSpec(memory_space=pltpu.MemorySpace.SMEM),   # b3 scalar
            ],
            # Lane-dense output block: one contiguous (1, block_b) row per grid step.
            out_specs=pl.BlockSpec((None, 1, block_b), lambda i: (i, 0, 0)),
        ),
        compiler_params=pltpu.CompilerParams(
            dimension_semantics=("parallel",),   # batch axis shards across TCs on v7x
            vmem_limit_bytes=vmem_limit_bytes,
        ),
    )(x, w1_bf, b1, w2_bf, b2, w3_row, b3_s)

    # (grid_b, 1, block_b) row-major flatten == batch order -> (n_rows, 1); free reshape.
    return out.reshape(n_rows, 1)


@functools.partial(jax.jit, static_argnames=("block_b", "vmem_limit_bytes"))
def binary_regressor_forward(x, w1, b1, w2, b2, w3, b3, *,
                             block_b=2048, vmem_limit_bytes=None):
    """Fused MLP forward.

    x: [B, inp_dim] float32 (or bfloat16) -> [B, 1] float32 sigmoid probabilities.
    Weights are stored [in, out] (transposed from PyTorch nn.Linear's [out, in]).
    Any batch size is accepted; only the (< block_b)-row tail is ever padded.

    block_b guidance: 2048 fits all generations at default scoped VMEM; on v6e use
    ~4096 and on v7x ~8192 (keeping grid_b >= ~8 for the 2-TC megacore), raising
    vmem_limit_bytes accordingly.
    """
    B, _ = x.shape
    n1 = w1.shape[1]
    n2 = w2.shape[1]
    assert block_b % 16 == 0, "block_b must be a multiple of 16 (bf16 sublane packing)"

    # Tiny resident operands: cast/reshape wrapper-side (negligible traffic).
    w1_bf = w1.astype(jnp.bfloat16)
    w2_bf = w2.astype(jnp.bfloat16)
    b1_r = b1.reshape(1, n1).astype(jnp.float32)
    b2_r = b2.reshape(1, n2).astype(jnp.float32)
    w3_row = w3.reshape(1, n2).astype(jnp.float32)   # lane-resident row
    b3_s = b3.reshape(1, 1).astype(jnp.float32)      # scalar bias -> SMEM

    main_rows = (B // block_b) * block_b
    pieces = []
    if main_rows > 0:
        pieces.append(_mlp_pallas(x[:main_rows], w1_bf, b1_r, w2_bf, b2_r,
                                  w3_row, b3_s, block_b, vmem_limit_bytes))
    tail = B - main_rows
    if tail > 0:
        tail_block = ((tail + 15) // 16) * 16
        x_tail = x[main_rows:]
        if tail_block != tail:
            x_tail = jnp.pad(x_tail, ((0, tail_block - tail), (0, 0)))
        out_tail = _mlp_pallas(x_tail, w1_bf, b1_r, w2_bf, b2_r,
                               w3_row, b3_s, tail_block, vmem_limit_bytes)
        pieces.append(out_tail[:tail])

    return pieces[0] if len(pieces) == 1 else jnp.concatenate(pieces, axis=0)


def init_params(key, inp_dim, n_nodes1, n_nodes2):
    """Deterministic synthetic init (roughly matching nn.Linear's uniform fan-in init)."""
    ks = jax.random.split(key, 6)

    def lin(kw, kb, fan_in, fan_out):
        bound = 1.0 / jnp.sqrt(fan_in)
        w = jax.random.uniform(kw, (fan_in, fan_out), jnp.float32, -bound, bound)
        b = jax.random.uniform(kb, (1, fan_out), jnp.float32, -bound, bound)
        return w, b

    w1, b1 = lin(ks[0], ks[1], inp_dim, n_nodes1)
    w2, b2 = lin(ks[2], ks[3], n_nodes1, n_nodes2)
    w3, b3 = lin(ks[4], ks[5], n_nodes2, 1)
    return w1, b1, w2, b2, w3, b3


def reference_forward(x, w1, b1, w2, b2, w3, b3):
    h1 = jnp.maximum(x @ w1 + b1, 0.0)
    h2 = jnp.maximum(h1 @ w2 + b2, 0.0)
    z = h2 @ w3 + b3
    return jax.nn.sigmoid(z)


if __name__ == "__main__":
    # hps-equivalent: inp_dim=192, n_nodes1=64, n_nodes2=32, drop_out inactive (eval).
    inp_dim, n_nodes1, n_nodes2 = 192, 64, 32
    block_b = 16  # small demo tile; production default is 2048 (up to 8192 on v7x)

    key = jax.random.PRNGKey(0)
    kx, kp = jax.random.split(key)
    params = init_params(kp, inp_dim, n_nodes1, n_nodes2)
    x = jax.random.normal(kx, (40, inp_dim), jnp.float32)

    # Even-divisible path: 32 rows / block_b=16 -> 2-step grid.
    out = binary_regressor_forward(x[:32], *params, block_b=block_b)
    out = jax.block_until_ready(out)
    ref = reference_forward(x[:32], *params)
    assert out.shape == (32, 1)
    # bf16 x/w casts inside the kernel -> compare vs f32 reference with loose tolerance.
    assert jnp.allclose(out, ref, atol=2e-2, rtol=2e-2), "mismatch vs reference (even batch)"

    # Ragged path: 40 rows -> 32-row main call + 8-row tail (padded to 16 rows only).
    out_r = binary_regressor_forward(x, *params, block_b=block_b)
    out_r = jax.block_until_ready(out_r)
    ref_r = reference_forward(x, *params)
    assert out_r.shape == (40, 1)
    assert jnp.allclose(out_r, ref_r, atol=2e-2, rtol=2e-2), "mismatch vs reference (ragged batch)"

    print("KERNEL_OK")
</pallas_src>

<mosaic_0001>
module attributes {stable_mosaic.version = 11 : i64} {
  func.func @_mlp_kernel(%arg0: i32, %arg1: memref<16x192xf32, #tpu.memory_space<vmem>>, %arg2: memref<192x64xbf16, #tpu.memory_space<vmem>>, %arg3: memref<1x64xf32, #tpu.memory_space<vmem>>, %arg4: memref<64x32xbf16, #tpu.memory_space<vmem>>, %arg5: memref<1x32xf32, #tpu.memory_space<vmem>>, %arg6: memref<1x32xf32, #tpu.memory_space<vmem>>, %arg7: memref<1x1xf32, #tpu.memory_space<smem>>, %arg8: memref<1x1x16xf32, #tpu.memory_space<vmem>>) attributes {dimension_semantics = [#tpu.dimension_semantics<parallel>], iteration_bounds = array<i64: 2>, scalar_prefetch = 0 : i64, scratch_operands = 0 : i64, tpu.core_type = #tpu.core_type<tc>, window_params = [{transform_indices = @transform_0, window_bounds = array<i64: 16, 192>}, {pipeline_mode = #tpu.pipeline_mode<synchronous>, transform_indices = @transform_1, window_bounds = array<i64: 192, 64>}, {pipeline_mode = #tpu.pipeline_mode<synchronous>, transform_indices = @transform_2, window_bounds = array<i64: 1, 64>}, {pipeline_mode = #tpu.pipeline_mode<synchronous>, transform_indices = @transform_3, window_bounds = array<i64: 64, 32>}, {pipeline_mode = #tpu.pipeline_mode<synchronous>, transform_indices = @transform_4, window_bounds = array<i64: 1, 32>}, {pipeline_mode = #tpu.pipeline_mode<synchronous>, transform_indices = @transform_5, window_bounds = array<i64: 1, 32>}, {transform_indices = @transform_6, window_bounds = array<i64: 1, 1>}, {transform_indices = @transform_7, window_bounds = array<i64: 1, 1, 16>}]} {
    %c0 = arith.constant 0 : index
    %c0_0 = arith.constant 0 : index
    %0 = vector.load %arg1[%c0, %c0_0] : memref<16x192xf32, #tpu.memory_space<vmem>>, vector<16x192xf32>
    %1 = arith.truncf %0 : vector<16x192xf32> to vector<16x192xbf16>
    %c0_1 = arith.constant 0 : index
    %c0_2 = arith.constant 0 : index
    %2 = vector.load %arg2[%c0_1, %c0_2] : memref<192x64xbf16, #tpu.memory_space<vmem>>, vector<192x64xbf16>
    %cst = arith.constant dense<0.000000e+00> : vector<16x64xf32>
    %3 = tpu.matmul %1, %2, %cst {dimension_numbers = #tpu.dot_dimension_numbers<[1], [0], [0], [1], [0, 0, 1, 1], [], []>} : vector<16x192xbf16>, vector<192x64xbf16>, vector<16x64xf32> -> vector<16x64xf32>
    %c0_3 = arith.constant 0 : index
    %c0_4 = arith.constant 0 : index
    %4 = vector.load %arg3[%c0_3, %c0_4] : memref<1x64xf32, #tpu.memory_space<vmem>>, vector<1x64xf32>
    %5 = vector.broadcast %4 : vector<1x64xf32> to vector<16x64xf32>
    %6 = arith.addf %3, %5 : vector<16x64xf32>
    %cst_5 = arith.constant 0.000000e+00 : f32
    %7 = vector.broadcast %cst_5 : f32 to vector<16x64xf32>
    %8 = arith.maximumf %6, %7 : vector<16x64xf32>
    %9 = arith.truncf %8 : vector<16x64xf32> to vector<16x64xbf16>
    %c0_6 = arith.constant 0 : index
    %c0_7 = arith.constant 0 : index
    %10 = vector.load %arg4[%c0_6, %c0_7] : memref<64x32xbf16, #tpu.memory_space<vmem>>, vector<64x32xbf16>
    %cst_8 = arith.constant dense<0.000000e+00> : vector<16x32xf32>
    %11 = tpu.matmul %9, %10, %cst_8 {dimension_numbers = #tpu.dot_dimension_numbers<[1], [0], [0], [1], [0, 0, 1, 1], [], []>} : vector<16x64xbf16>, vector<64x32xbf16>, vector<16x32xf32> -> vector<16x32xf32>
    %c0_9 = arith.constant 0 : index
    %c0_10 = arith.constant 0 : index
    %12 = vector.load %arg5[%c0_9, %c0_10] : memref<1x32xf32, #tpu.memory_space<vmem>>, vector<1x32xf32>
    %13 = vector.broadcast %12 : vector<1x32xf32> to vector<16x32xf32>
    %14 = arith.addf %11, %13 : vector<16x32xf32>
    %cst_11 = arith.constant 0.000000e+00 : f32
    %15 = vector.broadcast %cst_11 : f32 to vector<16x32xf32>
    %16 = arith.maximumf %14, %15 : vector<16x32xf32>
    %c0_12 = arith.constant 0 : index
    %c0_13 = arith.constant 0 : index
    %17 = vector.load %arg6[%c0_12, %c0_13] : memref<1x32xf32, #tpu.memory_space<vmem>>, vector<1x32xf32>
    %cst_14 = arith.constant dense<0.000000e+00> : vector<1x16xf32>
    %18 = tpu.matmul %17, %16, %cst_14 {dimension_numbers = #tpu.dot_dimension_numbers<[1], [1], [0], [0], [0, 0, 1, 0], [], []>} : vector<1x32xf32>, vector<16x32xf32>, vector<1x16xf32> -> vector<1x16xf32>
    %c0_15 = arith.constant 0 : index
    %c0_16 = arith.constant 0 : index
    %19 = memref.load %arg7[%c0_15, %c0_16] : memref<1x1xf32, #tpu.memory_space<smem>>
    %20 = vector.broadcast %19 : f32 to vector<1x16xf32>
    %21 = arith.addf %18, %20 : vector<1x16xf32>
    %cst_17 = arith.constant 0.000000e+00 : f32
    %22 = vector.broadcast %cst_17 : f32 to vector<1x16xf32>
    %23 = arith.subf %22, %21 : vector<1x16xf32>
    %24 = math.exp %23 : vector<1x16xf32>
    %cst_18 = arith.constant 1.000000e+00 : f32
    %25 = vector.broadcast %cst_18 : f32 to vector<1x16xf32>
    %26 = arith.addf %25, %24 : vector<1x16xf32>
    %cst_19 = arith.constant 1.000000e+00 : f32
    %27 = vector.broadcast %cst_19 : f32 to vector<1x16xf32>
    %28 = arith.divf %27, %26 : vector<1x16xf32>
    %c0_20 = arith.constant 0 : index
    %c0_21 = arith.constant 0 : index
    %c0_22 = arith.constant 0 : index
    %29 = vector.load %arg8[%c0_20, %c0_21, %c0_22] : memref<1x1x16xf32, #tpu.memory_space<vmem>>, vector<1x1x16xf32>
    %30 = vector.shape_cast %29 : vector<1x1x16xf32> to vector<1x16xf32>
    %31 = vector.shape_cast %28 : vector<1x16xf32> to vector<1x1x16xf32>
    tpu.vector_store %arg8[%c0_20, %c0_21, %c0_22], %31 {strides = array<i32>} : memref<1x1x16xf32, #tpu.memory_space<vmem>>, vector<1x1x16xf32>,
    return
  }
  func.func @transform_0(%arg0: i32) -> (i32, i32) {
    %c0_i32 = arith.constant 0 : i32
    %c0_i32_0 = arith.constant 0 : i32
    return %arg0, %c0_i32 : i32, i32
  }
  func.func @transform_1(%arg0: i32) -> (i32, i32) {
    %c0_i32 = arith.constant 0 : i32
    %c0_i32_0 = arith.constant 0 : i32
    %c0_i32_1 = arith.constant 0 : i32
    return %c0_i32, %c0_i32_0 : i32, i32
  }
  func.func @transform_2(%arg0: i32) -> (i32, i32) {
    %c0_i32 = arith.constant 0 : i32
    %c0_i32_0 = arith.constant 0 : i32
    %c0_i32_1 = arith.constant 0 : i32
    return %c0_i32, %c0_i32_0 : i32, i32
  }
  func.func @transform_3(%arg0: i32) -> (i32, i32) {
    %c0_i32 = arith.constant 0 : i32
    %c0_i32_0 = arith.constant 0 : i32
    %c0_i32_1 = arith.constant 0 : i32
    return %c0_i32, %c0_i32_0 : i32, i32
  }
  func.func @transform_4(%arg0: i32) -> (i32, i32) {
    %c0_i32 = arith.constant 0 : i32
    %c0_i32_0 = arith.constant 0 : i32
    %c0_i32_1 = arith.constant 0 : i32
    return %c0_i32, %c0_i32_0 : i32, i32
  }
  func.func @transform_5(%arg0: i32) -> (i32, i32) {
    %c0_i32 = arith.constant 0 : i32
    %c0_i32_0 = arith.constant 0 : i32
    %c0_i32_1 = arith.constant 0 : i32
    return %c0_i32, %c0_i32_0 : i32, i32
  }
  func.func @transform_6(%arg0: i32) -> (i32, i32) {
    %c0_i32 = arith.constant 0 : i32
    %c0_i32_0 = arith.constant 0 : i32
    %c0_i32_1 = arith.constant 0 : i32
    return %c0_i32, %c0_i32_0 : i32, i32
  }
  func.func @transform_7(%arg0: i32) -> (i32, i32, i32) {
    %c0_i32 = arith.constant 0 : i32
    %c0_i32_0 = arith.constant 0 : i32
    %c0_i32_1 = arith.constant 0 : i32
    return %arg0, %c0_i32, %c0_i32_0 : i32, i32, i32
  }
}

</mosaic_0001>

<llo_original>
// kernel: binary_regressor_forward.1
$region0: #{binary_regressor_forward.1}
  #allocation0 [shape = 'u32[]', space=smem, size = 0x4, offset = 0x4, fixed_abs, tag = 'smem constant byte address 0x4 - core index']
  #allocation1 [shape = 'u32[144,128]{1,0:T(1,128)}', space=vmem, size = 0x12000, scoped, tag = 'internal scratch']
  #allocation2 [shape = 'f32[1,1]{1,0:T(1,128)S(6)}', space=smem, size = 0x200, scoped, tag = 'scoped memory for binary_regressor_forward.1']
  %s0 = inlined_call_operand.vmem [shape: f32[32,192], index: 0, kind: input, shape index: {}]
  %s1 = inlined_call_operand.vmem [shape: bf16[192,64], index: 1, kind: input, shape index: {}]
  %s2 = inlined_call_operand.vmem [shape: f32[1,64], index: 2, kind: input, shape index: {}]
  %s3 = inlined_call_operand.vmem [shape: bf16[64,32], index: 3, kind: input, shape index: {}]
  %s4 = inlined_call_operand.vmem [shape: f32[1,32], index: 4, kind: input, shape index: {}]
  %s5 = inlined_call_operand.vmem [shape: f32[1,32], index: 5, kind: input, shape index: {}]
  %s6 = inlined_call_operand.<no memory space> [shape: f32[1,1], index: 6, kind: input, shape index: {}]
  %s7 = inlined_call_operand.vmem [shape: f32[2,1,16], index: 7, kind: output, shape index: {}]
  %s8 = sld [smem:[#allocation0]]
  $region61: #{binary_regressor_forward.1} parent=0
    _
  %s10 = ssub.s32 1, %s8
  %s11 = scalar_select 0, %s10, %s8
  %12 = sst [smem:[#allocation2]] %s6
  loop: start=0, step=1, limit=4
  $region2: #{binary_regressor_forward.1} parent=0 // loop_pre_header
    _
  $region3: #{binary_regressor_forward.1} parent=0 // loop_header
    %s14 = sphi 0, %s18
    %p15 = scmp.ge.s32.totalorder %s14, 4
    %s24 = sphi 0, %s26
    %s27 = sphi 0, %s24
    %s28 = sphi 0, %s27
    %s44 = sphi 0, %s28
    %s48 = sphi 0, %s48
    %s50 = sphi 0, %s48
    %s51 = sphi 0, %s50
    %s65 = sphi 0, %s51
    %s69 = sphi 0, %s69
    %s71 = sphi 0, %s69
    %s72 = sphi 0, %s71
    %s86 = sphi 0, %s72
    %s90 = sphi 0, %s90
    %s92 = sphi 0, %s90
    %s93 = sphi 0, %s92
    %s107 = sphi 0, %s93
    %s111 = sphi 0, %s111
    %s113 = sphi 0, %s111
    %s114 = sphi 0, %s113
    %s128 = sphi 0, %s114
    %s132 = sphi 0, %s132
    %s134 = sphi 0, %s132
    %s135 = sphi 0, %s134
    %s149 = sphi 0, %s135
    %s153 = sphi 0, %s153
    %s155 = sphi 0, %s153
    %s156 = sphi 0, %s155
    %s170 = sphi 0, %s156
    %s176 = sphi 0, %s178
    %s179 = sphi 0, %s176
    %s180 = sphi 0, %s179
    %s196 = sphi 0, %s180
  $region4: #{binary_regressor_forward.1} parent=0 // loop_header_branch
    %17 = sbr.rel (%p15) target = $region8
  $region5: #{binary_regressor_forward.1} parent=0 // loop_body
    %s19 = ssub.s32 %s14, 1
    %s20 = ssub.s32 %s14, 2
    %s21 = sadd.s32 %s14, 1
    %s22 = ssub.s32 %s14, %s21
    %p23 = scmp.eq.s32.totalorder %s22, 0
    %s25 = sadd.s32 %s24, 1
    %s26 = scalar_select %p23, %s24, %s25
    %p29 = pneg %p23
    %p30 = scmp.eq.s32.totalorder %s14, 1
    %p31 = por %p29, %p30
    %p32 = scmp.ne.s32.totalorder %s24, %s27
    %p33 = scmp.eq.s32.totalorder %s14, 0
    %p34 = por %p32, %p33
    %p35 = scmp.ne.s32.totalorder %s24, %s27
    %p36 = scmp.eq.s32.totalorder %s19, 1
    %p37 = por %p35, %p36
    %p38 = scmp.ne.s32.totalorder %s27, %s28
    %p39 = scmp.eq.s32.totalorder %s19, 0
    %p40 = por %p38, %p39
    %p41 = scmp.ne.s32.totalorder %s27, %s28
    %p42 = scmp.eq.s32.totalorder %s20, 1
    %p43 = por %p41, %p42
    %p45 = scmp.ne.s32.totalorder %s28, %s44
    %p46 = scmp.eq.s32.totalorder %s20, 0
    %p47 = por %p45, %p46
    %s49 = sadd.s32 %s48, 1
    %p52 = scmp.eq.s32.totalorder %s14, 1
    %p53 = scmp.ne.s32.totalorder %s48, %s50
    %p54 = scmp.eq.s32.totalorder %s14, 0
    %p55 = por %p53, %p54
    %p56 = scmp.ne.s32.totalorder %s48, %s50
    %p57 = scmp.eq.s32.totalorder %s19, 1
    %p58 = por %p56, %p57
    %p59 = scmp.ne.s32.totalorder %s50, %s51
    %p60 = scmp.eq.s32.totalorder %s19, 0
    %p61 = por %p59, %p60
    %p62 = scmp.ne.s32.totalorder %s50, %s51
    %p63 = scmp.eq.s32.totalorder %s20, 1
    %p64 = por %p62, %p63
    %p66 = scmp.ne.s32.totalorder %s51, %s65
    %p67 = scmp.eq.s32.totalorder %s20, 0
    %p68 = por %p66, %p67
    %s70 = sadd.s32 %s69, 1
    %p73 = scmp.eq.s32.totalorder %s14, 1
    %p74 = scmp.ne.s32.totalorder %s69, %s71
    %p75 = scmp.eq.s32.totalorder %s14, 0
    %p76 = por %p74, %p75
    %p77 = scmp.ne.s32.totalorder %s69, %s71
    %p78 = scmp.eq.s32.totalorder %s19, 1
    %p79 = por %p77, %p78
    %p80 = scmp.ne.s32.totalorder %s71, %s72
    %p81 = scmp.eq.s32.totalorder %s19, 0
    %p82 = por %p80, %p81
    %p83 = scmp.ne.s32.totalorder %s71, %s72
    %p84 = scmp.eq.s32.totalorder %s20, 1
    %p85 = por %p83, %p84
    %p87 = scmp.ne.s32.totalorder %s72, %s86
    %p88 = scmp.eq.s32.totalorder %s20, 0
    %p89 = por %p87, %p88
    %s91 = sadd.s32 %s90, 1
    %p94 = scmp.eq.s32.totalorder %s14, 1
    %p95 = scmp.ne.s32.totalorder %s90, %s92
    %p96 = scmp.eq.s32.totalorder %s14, 0
    %p97 = por %p95, %p96
    %p98 = scmp.ne.s32.totalorder %s90, %s92
    %p99 = scmp.eq.s32.totalorder %s19, 1
    %p100 = por %p98, %p99
    %p101 = scmp.ne.s32.totalorder %s92, %s93
    %p102 = scmp.eq.s32.totalorder %s19, 0
    %p103 = por %p101, %p102
    %p104 = scmp.ne.s32.totalorder %s92, %s93
    %p105 = scmp.eq.s32.totalorder %s20, 1
    %p106 = por %p104, %p105
    %p108 = scmp.ne.s32.totalorder %s93, %s107
    %p109 = scmp.eq.s32.totalorder %s20, 0
    %p110 = por %p108, %p109
    %s112 = sadd.s32 %s111, 1
    %p115 = scmp.eq.s32.totalorder %s14, 1
    %p116 = scmp.ne.s32.totalorder %s111, %s113
    %p117 = scmp.eq.s32.totalorder %s14, 0
    %p118 = por %p116, %p117
    %p119 = scmp.ne.s32.totalorder %s111, %s113
    %p120 = scmp.eq.s32.totalorder %s19, 1
    %p121 = por %p119, %p120
    %p122 = scmp.ne.s32.totalorder %s113, %s114
    %p123 = scmp.eq.s32.totalorder %s19, 0
    %p124 = por %p122, %p123
    %p125 = scmp.ne.s32.totalorder %s113, %s114
    %p126 = scmp.eq.s32.totalorder %s20, 1
    %p127 = por %p125, %p126
    %p129 = scmp.ne.s32.totalorder %s114, %s128
    %p130 = scmp.eq.s32.totalorder %s20, 0
    %p131 = por %p129, %p130
    %s133 = sadd.s32 %s132, 1
    %p136 = scmp.eq.s32.totalorder %s14, 1
    %p137 = scmp.ne.s32.totalorder %s132, %s134
    %p138 = scmp.eq.s32.totalorder %s14, 0
    %p139 = por %p137, %p138
    %p140 = scmp.ne.s32.totalorder %s132, %s134
    %p141 = scmp.eq.s32.totalorder %s19, 1
    %p142 = por %p140, %p141
    %p143 = scmp.ne.s32.totalorder %s134, %s135
    %p144 = scmp.eq.s32.totalorder %s19, 0
    %p145 = por %p143, %p144
    %p146 = scmp.ne.s32.totalorder %s134, %s135
    %p147 = scmp.eq.s32.totalorder %s20, 1
    %p148 = por %p146, %p147
    %p150 = scmp.ne.s32.totalorder %s135, %s149
    %p151 = scmp.eq.s32.totalorder %s20, 0
    %p152 = por %p150, %p151
    %s154 = sadd.s32 %s153, 1
    %p157 = scmp.eq.s32.totalorder %s14, 1
    %p158 = scmp.ne.s32.totalorder %s153, %s155
    %p159 = scmp.eq.s32.totalorder %s14, 0
    %p160 = por %p158, %p159
    %p161 = scmp.ne.s32.totalorder %s153, %s155
    %p162 = scmp.eq.s32.totalorder %s19, 1
    %p163 = por %p161, %p162
    %p164 = scmp.ne.s32.totalorder %s155, %s156
    %p165 = scmp.eq.s32.totalorder %s19, 0
    %p166 = por %p164, %p165
    %p167 = scmp.ne.s32.totalorder %s155, %s156
    %p168 = scmp.eq.s32.totalorder %s20, 1
    %p169 = por %p167, %p168
    %p171 = scmp.ne.s32.totalorder %s156, %s170
    %p172 = scmp.eq.s32.totalorder %s20, 0
    %p173 = por %p171, %p172
    %s174 = ssub.s32 %s14, %s21
    %p175 = scmp.eq.s32.totalorder %s174, 0
    %s177 = sadd.s32 %s176, 1
    %s178 = scalar_select %p175, %s176, %s177
    %p181 = pneg %p175
    %p182 = scmp.eq.s32.totalorder %s14, 1
    %p183 = por %p181, %p182
    %p184 = scmp.ne.s32.totalorder %s176, %s179
    %p185 = scmp.eq.s32.totalorder %s14, 0
    %p186 = por %p184, %p185
    %p187 = scmp.ne.s32.totalorder %s176, %s179
    %p188 = scmp.eq.s32.totalorder %s19, 1
    %p189 = por %p187, %p188
    %p190 = scmp.ne.s32.totalorder %s179, %s180
    %p191 = scmp.eq.s32.totalorder %s19, 0
    %p192 = por %p190, %p191
    %p193 = scmp.ne.s32.totalorder %s179, %s180
    %p194 = scmp.eq.s32.totalorder %s20, 1
    %p195 = por %p193, %p194
    %p197 = scmp.ne.s32.totalorder %s180, %s196
    %p198 = scmp.eq.s32.totalorder %s20, 0
    %p199 = por %p197, %p198
    %p200 = scmp.le.s32.totalorder 1, %s14
    %p201 = scmp.lt.s32.totalorder %s14, 3
    %p202 = pnand %p200, %p201
    %p203 = pneg %p202
    // Predicated region
    $region9: #{binary_regressor_forward.1} parent=5 // pred_check
      _
    $region10: #{binary_regressor_forward.1} parent=5 // pred_check_branch
      %205 = sbr.rel (%p202) target = $region12
    $region11: #{binary_regressor_forward.1} parent=5 // pred_region
      %s206 = ssub.s32 %s14, 1
      // Predicated region
      $region13: #{binary_regressor_forward.1} parent=11 // pred_check
        %p207 = pneg %p61
      $region14: #{binary_regressor_forward.1} parent=11 // pred_check_branch
        %209 = sbr.rel (%p207) target = $region16
      $region15: #{binary_regressor_forward.1} parent=11 // pred_region
        _
      $region16: #{binary_regressor_forward.1} parent=11 // pred_fallthru
        _
      // Predicated region
      $region17: #{binary_regressor_forward.1} parent=11 // pred_check
        %p210 = pneg %p82
      $region18: #{binary_regressor_forward.1} parent=11 // pred_check_branch
        %212 = sbr.rel (%p210) target = $region20
      $region19: #{binary_regressor_forward.1} parent=11 // pred_region
        _
      $region20: #{binary_regressor_forward.1} parent=11 // pred_fallthru
        _
      // Predicated region
      $region21: #{binary_regressor_forward.1} parent=11 // pred_check
        %p213 = pneg %p103
      $region22: #{binary_regressor_forward.1} parent=11 // pred_check_branch
        %215 = sbr.rel (%p213) target = $region24
      $region23: #{binary_regressor_forward.1} parent=11 // pred_region
        _
      $region24: #{binary_regressor_forward.1} parent=11 // pred_fallthru
        _
      // Predicated region
      $region25: #{binary_regressor_forward.1} parent=11 // pred_check
        %p216 = pneg %p124
      $region26: #{binary_regressor_forward.1} parent=11 // pred_check_branch
        %218 = sbr.rel (%p216) target = $region28
      $region27: #{binary_regressor_forward.1} parent=11 // pred_region
        _
      $region28: #{binary_regressor_forward.1} parent=11 // pred_fallthru
        _
      // Predicated region
      $region29: #{binary_regressor_forward.1} parent=11 // pred_check
        %p219 = pneg %p145
      $region30: #{binary_regressor_forward.1} parent=11 // pred_check_branch
        %221 = sbr.rel (%p219) target = $region32
      $region31: #{binary_regressor_forward.1} parent=11 // pred_region
        _
      $region32: #{binary_regressor_forward.1} parent=11 // pred_fallthru
        _
      // Predicated region
      $region33: #{binary_regressor_forward.1} parent=11 // pred_check
        %p222 = pneg %p166
      $region34: #{binary_regressor_forward.1} parent=11 // pred_check_branch
        %224 = sbr.rel (%p222) target = $region36
      $region35: #{binary_regressor_forward.1} parent=11 // pred_region
        _
      $region36: #{binary_regressor_forward.1} parent=11 // pred_fallthru
        _
    $region12: #{binary_regressor_forward.1} parent=5 // pred_fallthru
      _
    %p225 = scmp.lt.s32.totalorder %s14, 2
    // Predicated region
    $region37: #{binary_regressor_forward.1} parent=5 // pred_check
      %p226 = pneg %p225
    $region38: #{binary_regressor_forward.1} parent=5 // pred_check_branch
      %228 = sbr.rel (%p226) target = $region40
    $region39: #{binary_regressor_forward.1} parent=5 // pred_region
      // Predicated region
      $region41: #{binary_regressor_forward.1} parent=39 // pred_check
        %p229 = pneg %p34
      $region42: #{binary_regressor_forward.1} parent=39 // pred_check_branch
        %231 = sbr.rel (%p229) target = $region44
      $region43: #{binary_regressor_forward.1} parent=39 // pred_region
        %s232 = smul.u32 2, %s14
        %p233 = scmp.lt.s32.totalorder %s232, 3
        %s234 = scalar_select %p233, %s232, 3
        %s235 = smul.addr %s234, 2
        %s236 = smul.addr %s235, 8
        %s237 = scalar_lea.vmem %s0, %s236
        %s238 = smul.u32 2, %s14
      $region44: #{binary_regressor_forward.1} parent=39 // pred_fallthru
        _
    $region40: #{binary_regressor_forward.1} parent=5 // pred_fallthru
      _
    %p239 = scmp.le.s32.totalorder 1, %s14
    %p240 = scmp.lt.s32.totalorder %s14, 3
    %p241 = pnand %p239, %p240
    %p242 = pneg %p241
    // Predicated region
    $region45: #{binary_regressor_forward.1} parent=5 // pred_check
      _
    $region46: #{binary_regressor_forward.1} parent=5 // pred_check_branch
      %244 = sbr.rel (%p241) target = $region48
    $region47: #{binary_regressor_forward.1} parent=5 // pred_region
      %s245 = ssub.s32 %s14, 1
      %s246 = smul.u32 2, %s19
      %p247 = scmp.lt.s32.totalorder %s246, 3
      %s248 = scalar_select %p247, %s246, 3
      %s249 = smul.addr %s248, 2
      %s250 = smul.addr %s249, 8
      %s251 = scalar_lea.vmem %s0, %s250
      %p252 = pneg %p40
      %p253 = pneg %p37
      %p254 = pneg %p61
      %p255 = pneg %p58
      %p256 = pneg %p82
      %p257 = pneg %p79
      %p258 = pneg %p103
      %p259 = pneg %p100
      %p260 = pneg %p124
      %p261 = pneg %p121
      %p262 = pneg %p145
      %p263 = pneg %p142
      %p264 = pneg %p166
      %p265 = pneg %p163
      %p266 = pneg %p192
      %p267 = pneg %p189
      %p268 = scmp.lt.s32.totalorder %s19, 1
      %s269 = scalar_select %p268, %s19, 1
      %s270 = scalar_lea.vmem %s7, %s269
      %s271 = smul.u32 2, %s19
      %p272 = scmp.lt.s32.totalorder %s271, 3
      %s273 = scalar_select %p272, %s271, 3
      %s274 = smul.addr %s273, 2
      %s275 = smul.addr %s274, 8
      %s276 = scalar_lea.vmem %s0, %s275
      %s277 = smul.u32 2, %s19
      %p278 = scmp.lt.s32.totalorder %s19, 1
      %s279 = scalar_select %p278, %s19, 1
      %s280 = scalar_lea.vmem %s7, %s279
      %v282 = vld [vmem:[%s276] sm:$0xff]
      %v283 = vld [vmem:[%s276 + $0x8] sm:$0xff]
      %v284 = vld [vmem:[%s276 + $0x10] sm:$0xff]
      %v285 = vld [vmem:[%s276 + $0x18] sm:$0xff]
      %v286 = vpack.c.bf16 %v284, %v282
      %v287 = vpack.c.bf16 %v285, %v283
      %v288 = vld [vmem:[%s1] sm:$0xf]
      %v289 = vld [vmem:[%s1 + $0x4] sm:$0xf]
      %v290 = vld [vmem:[%s1 + $0x8] sm:$0xf]
      %v291 = vld [vmem:[%s1 + $0xc] sm:$0xf]
      %v292 = vld [vmem:[%s1 + $0x10] sm:$0xf]
      %v293 = vld [vmem:[%s1 + $0x14] sm:$0xf]
      %v294 = vld [vmem:[%s1 + $0x18] sm:$0xf]
      %v295 = vld [vmem:[%s1 + $0x1c] sm:$0xf]
      %v296 = vld [vmem:[%s1 + $0x20] sm:$0xf]
      %v297 = vld [vmem:[%s1 + $0x24] sm:$0xf]
      %v298 = vld [vmem:[%s1 + $0x28] sm:$0xf]
      %v299 = vld [vmem:[%s1 + $0x2c] sm:$0xf]
      %v300 = vld [vmem:[%s1 + $0x30] sm:$0xf]
      %v301 = vld [vmem:[%s1 + $0x34] sm:$0xf]
      %v302 = vld [vmem:[%s1 + $0x38] sm:$0xf]
      %v303 = vld [vmem:[%s1 + $0x3c] sm:$0xf]
      %v304 = vld [vmem:[%s1 + $0x40] sm:$0xf]
      %v305 = vld [vmem:[%s1 + $0x44] sm:$0xf]
      %v306 = vld [vmem:[%s1 + $0x48] sm:$0xf]
      %v307 = vld [vmem:[%s1 + $0x4c] sm:$0xf]
      %v308 = vld [vmem:[%s1 + $0x50] sm:$0xf]
      %v309 = vld [vmem:[%s1 + $0x54] sm:$0xf]
      %v310 = vld [vmem:[%s1 + $0x58] sm:$0xf]
      %v311 = vld [vmem:[%s1 + $0x5c] sm:$0xf]
      %v312 = vld [vmem:[%s2] sm:$0x1]
      %v314 = vlaneseq
      %v315 = vshrl.u32 %v314, 7
      %v316 = vsub.s32 0, %v315
      %v317 = vrot.slane %v312, %v316
      %v343 = vunpack.c.l.b16 %v288
      %v344 = vunpack.c.l.b16 %v289
      %v345 = vunpack.c.l.b16 %v290
      %v346 = vunpack.c.l.b16 %v291
      %v347 = vunpack.c.l.b16 %v292
      %v348 = vunpack.c.l.b16 %v293
      %v349 = vunpack.c.l.b16 %v294
      %v350 = vunpack.c.l.b16 %v295
      %v351 = vunpack.c.l.b16 %v296
      %v352 = vunpack.c.l.b16 %v297
      %v353 = vunpack.c.l.b16 %v298
      %v354 = vunpack.c.l.b16 %v299
      %v355 = vunpack.c.l.b16 %v300
      %v356 = vunpack.c.l.b16 %v301
      %v357 = vunpack.c.l.b16 %v302
      %v358 = vunpack.c.l.b16 %v303
      %v359 = vunpack.c.l.b16 %v304
      %v360 = vunpack.c.l.b16 %v305
      %v361 = vunpack.c.l.b16 %v306
      %v362 = vunpack.c.l.b16 %v307
      %v363 = vunpack.c.l.b16 %v308
      %v364 = vunpack.c.l.b16 %v309
      %v365 = vunpack.c.l.b16 %v310
      %v366 = vunpack.c.l.b16 %v311
      %v367 = vpack.c.b16 %v344, %v343
      %v368 = vpack.c.b16 %v346, %v345
      %v369 = vpack.c.b16 %v348, %v347
      %v370 = vpack.c.b16 %v350, %v349
      %v371 = vpack.c.b16 %v352, %v351
      %v372 = vpack.c.b16 %v354, %v353
      %v373 = vpack.c.b16 %v356, %v355
      %v374 = vpack.c.b16 %v358, %v357
      %v375 = vpack.c.b16 %v360, %v359
      %v376 = vpack.c.b16 %v362, %v361
      %v377 = vpack.c.b16 %v364, %v363
      %v378 = vpack.c.b16 %v366, %v365
      %vm391 = vcmask 523264
      %v393 = vsel %vm391, %v287, 0
      %395 = vmatprep.subr.bf16.mxu0 0
      %396 = vmatpush1.bf16.msra.mxu0 %v367
      %397 = vmatprep.subr.bf16.mxu0 0
      %398 = vmatpush1.bf16.msra.mxu0 %v368
      %399 = vmatprep.subr.bf16.mxu0 0
      %400 = vmatpush1.bf16.msra.mxu0 %v369
      %401 = vmatprep.subr.bf16.mxu0 0
      %402 = vmatpush1.bf16.msra.mxu0 %v370
      %403 = vmatprep.subr.bf16.mxu0 0
      %404 = vmatpush1.bf16.msra.mxu0 %v371
      %405 = vmatprep.subr.bf16.mxu0 0
      %406 = vmatpush1.bf16.msra.mxu0 %v372
      %407 = vmatprep.subr.bf16.mxu0 0
      %408 = vmatpush1.bf16.msra.mxu0 %v373
      %409 = vmatprep.subr.bf16.mxu0 0
      %410 = vmatpush1.bf16.msra.mxu0 %v374
      %411 = vmatprep.subr.bf16.mxu0 0
      %412 = vmatpush1.bf16.msra.mxu0 %v375
      %413 = vmatprep.subr.bf16.mxu0 0
      %414 = vmatpush1.bf16.msra.mxu0 %v376
      %415 = vmatprep.subr.bf16.mxu0 0
      %416 = vmatpush1.bf16.msra.mxu0 %v377
      %417 = vmatprep.subr.bf16.mxu0 0
      %418 = vmatpush1.bf16.msra.mxu0 %v378
      %419 = vmatprep.subr.bf16.mxu0 0
      %420 = vmatpush1.bf16.msra.mxu0 0
      %421 = vmatprep.subr.bf16.mxu0 0
      %422 = vmatpush1.bf16.msra.mxu0 0
      %423 = vmatprep.subr.bf16.mxu0 0
      %424 = vmatpush1.bf16.msra.mxu0 0
      %425 = vmatprep.subr.bf16.mxu0 0
      %426 = vmatpush1.bf16.msra.mxu0 0
      %427 = vmatprep.mubr.bf16.mxu0 %v393
      %428 = vmatmul.mubr.bf16.gmra.mrb[0].mxu0 %v286
      %v429 = vpop.f32.mrb[0].mxu0
      %v430 = vadd.f32 %v317, %v429
      %v431 = vpop.f32.mrb[0].mxu0
      %v432 = vpop.f32.mrb[0].mxu0
      %v433 = vadd.f32 %v317, %v432
      %v434 = vpop.f32.mrb[0].mxu0
      %435 = vdwg.mxu0
      %v436 = vmax.f32 %v430, 0.0
      %v437 = vmax.f32 %v433, 0.0
      %v438 = vpack.c.bf16 %v437, %v436
      %v439 = vld [vmem:[%s3] sm:$0xf]
      %v440 = vld [vmem:[%s3 + $0x4] sm:$0xf]
      %v441 = vld [vmem:[%s3 + $0x8] sm:$0xf]
      %v442 = vld [vmem:[%s3 + $0xc] sm:$0xf]
      %v443 = vld [vmem:[%s3 + $0x10] sm:$0xf]
      %v444 = vld [vmem:[%s3 + $0x14] sm:$0xf]
      %v445 = vld [vmem:[%s3 + $0x18] sm:$0xf]
      %v446 = vld [vmem:[%s3 + $0x1c] sm:$0xf]
      %v447 = vld [vmem:[%s4] sm:$0x1]
      %v449 = vlaneseq
      %v450 = vshrl.u32 %v449, 7
      %v451 = vsub.s32 0, %v450
      %v452 = vrot.slane %v447, %v451
      %v462 = vunpack.c.l.b16 %v439
      %v463 = vunpack.c.l.b16 %v440
      %v464 = vunpack.c.l.b16 %v441
      %v465 = vunpack.c.l.b16 %v442
      %v466 = vunpack.c.l.b16 %v443
      %v467 = vunpack.c.l.b16 %v444
      %v468 = vunpack.c.l.b16 %v445
      %v469 = vunpack.c.l.b16 %v446
      %v470 = vpack.c.b16 %v463, %v462
      %v471 = vpack.c.b16 %v465, %v464
      %v472 = vpack.c.b16 %v467, %v466
      %v473 = vpack.c.b16 %v469, %v468
      %v479 = vsel %vm391, %v438, 0
      %481 = vmatprep.subr.bf16.mxu0 0
      %482 = vmatpush1.bf16.msra.mxu0 %v470
      %483 = vmatprep.subr.bf16.mxu0 0
      %484 = vmatpush1.bf16.msra.mxu0 %v471
      %485 = vmatprep.subr.bf16.mxu0 0
      %486 = vmatpush1.bf16.msra.mxu0 %v472
      %487 = vmatprep.subr.bf16.mxu0 0
      %488 = vmatpush1.bf16.msra.mxu0 %v473
      %489 = vmatprep.subr.bf16.mxu0 0
      %490 = vmatpush1.bf16.msra.mxu0 0
      %491 = vmatprep.subr.bf16.mxu0 0
      %492 = vmatpush1.bf16.msra.mxu0 0
      %493 = vmatprep.subr.bf16.mxu0 0
      %494 = vmatpush1.bf16.msra.mxu0 0
      %495 = vmatprep.subr.bf16.mxu0 0
      %496 = vmatpush1.bf16.msra.mxu0 0
      %497 = vmatprep.subr.bf16.mxu0 0
      %498 = vmatpush1.bf16.msra.mxu0 0
      %499 = vmatprep.subr.bf16.mxu0 0
      %500 = vmatpush1.bf16.msra.mxu0 0
      %501 = vmatprep.subr.bf16.mxu0 0
      %502 = vmatpush1.bf16.msra.mxu0 0
      %503 = vmatprep.subr.bf16.mxu0 0
      %504 = vmatpush1.bf16.msra.mxu0 0
      %505 = vmatprep.subr.bf16.mxu0 0
      %506 = vmatpush1.bf16.msra.mxu0 0
      %507 = vmatprep.subr.bf16.mxu0 0
      %508 = vmatpush1.bf16.msra.mxu0 0
      %509 = vmatprep.subr.bf16.mxu0 0
      %510 = vmatpush1.bf16.msra.mxu0 0
      %511 = vmatprep.subr.bf16.mxu0 0
      %512 = vmatpush1.bf16.msra.mxu0 0
      %513 = vmatprep.mubr.bf16.mxu0 0
      %514 = vmatmul.mubr.bf16.gmra.mrb[0].mxu0 %v479
      %v515 = vpop.f32.mrb[0].mxu0
      %v516 = vadd.f32 %v452, %v515
      %v517 = vpop.f32.mrb[0].mxu0
      %v518 = vpop.f32.mrb[0].mxu0
      %v519 = vadd.f32 %v452, %v518
      %v520 = vpop.f32.mrb[0].mxu0
      %521 = vdwg.mxu0
      %v522 = vmax.f32 %v516, 0.0
      %v523 = vmax.f32 %v519, 0.0
      %v524 = vld [vmem:[%s5] sm:$0x1]
      %s525 = sld [smem:[#allocation2]]
      %v526 = vstv %s525
      %vm527 = vcmask 261120
      %v529 = vsel %vm527, %v524, 0
      %v532 = vsel %vm527, %v522, 0
      %v535 = vsel %vm527, %v523, 0
      %537 = vmatprep.subr.mxu0 0.0
      %538 = vmatpush1.xpose.msra.mxu0 %v532
      %539 = vmatprep.subr.mxu0 0.0
      %540 = vmatpush1.xpose.msra.mxu0 %v535
      %541 = vmatprep.subr.mxu0 0.0
      %542 = vmatpush1.xpose.msra.mxu0 0.0
      %543 = vmatprep.subr.mxu0 0.0
      %544 = vmatpush1.xpose.msra.mxu0 0.0
      %545 = vmatprep.subr.mxu0 0.0
      %546 = vmatpush1.xpose.msra.mxu0 0.0
      %547 = vmatprep.subr.mxu0 0.0
      %548 = vmatpush1.xpose.msra.mxu0 0.0
      %549 = vmatprep.subr.mxu0 0.0
      %550 = vmatpush1.xpose.msra.mxu0 0.0
      %551 = vmatprep.subr.mxu0 0.0
      %552 = vmatpush1.xpose.msra.mxu0 0.0
      %553 = vmatprep.subr.mxu0 0.0
      %554 = vmatpush1.xpose.msra.mxu0 0.0
      %555 = vmatprep.subr.mxu0 0.0
      %556 = vmatpush1.xpose.msra.mxu0 0.0
      %557 = vmatprep.subr.mxu0 0.0
      %558 = vmatpush1.xpose.msra.mxu0 0.0
      %559 = vmatprep.subr.mxu0 0.0
      %560 = vmatpush1.xpose.msra.mxu0 0.0
      %561 = vmatprep.subr.mxu0 0.0
      %562 = vmatpush1.xpose.msra.mxu0 0.0
      %563 = vmatprep.subr.mxu0 0.0
      %564 = vmatpush1.xpose.msra.mxu0 0.0
      %565 = vmatprep.subr.mxu0 0.0
      %566 = vmatpush1.xpose.msra.mxu0 0.0
      %567 = vmatprep.subr.mxu0 0.0
      %568 = vmatpush1.xpose.msra.mxu0 0.0
      %569 = vmatprep.subr.mxu0 0.0
      %570 = vmatpush1.xpose.msra.mxu0 0.0
      %571 = vmatprep.subr.mxu0 0.0
      %572 = vmatpush1.xpose.msra.mxu0 0.0
      %573 = vmatprep.subr.mxu0 0.0
      %574 = vmatpush1.xpose.msra.mxu0 0.0
      %575 = vmatprep.subr.mxu0 0.0
      %576 = vmatpush1.xpose.msra.mxu0 0.0
      %577 = vmatprep.subr.mxu0 0.0
      %578 = vmatpush1.xpose.msra.mxu0 0.0
      %579 = vmatprep.subr.mxu0 0.0
      %580 = vmatpush1.xpose.msra.mxu0 0.0
      %581 = vmatprep.subr.mxu0 0.0
      %582 = vmatpush1.xpose.msra.mxu0 0.0
      %583 = vmatprep.subr.mxu0 0.0
      %584 = vmatpush1.xpose.msra.mxu0 0.0
      %585 = vmatprep.subr.mxu0 0.0
      %586 = vmatpush1.xpose.msra.mxu0 0.0
      %587 = vmatprep.subr.mxu0 0.0
      %588 = vmatpush1.xpose.msra.mxu0 0.0
      %589 = vmatprep.subr.mxu0 0.0
      %590 = vmatpush1.xpose.msra.mxu0 0.0
      %591 = vmatprep.subr.mxu0 0.0
      %592 = vmatpush1.xpose.msra.mxu0 0.0
      %593 = vmatprep.subr.mxu0 0.0
      %594 = vmatpush1.xpose.msra.mxu0 0.0
      %595 = vmatprep.subr.mxu0 0.0
      %596 = vmatpush1.xpose.msra.mxu0 0.0
      %597 = vmatprep.subr.mxu0 0.0
      %598 = vmatpush1.xpose.msra.mxu0 0.0
      %599 = vmatprep.subr.mxu0 0.0
      %600 = vmatpush1.xpose.msra.mxu0 0.0
      %601 = vmatprep.mubr.f32.mxu0 0.0
      %602 = vmatmul.mubr.f32.gmra.mrb[0].mxu0 %v529
      %v603 = vpop.f32.mrb[0].mxu0
      %v604 = vadd.f32 %v526, %v603
      %v605 = vpop.f32.mrb[0].mxu0
      %606 = vdwg.mxu0
      %v607 = vsub.f32 0.0, %v604
      %v608 = vmul.f32 %v607, 1.442695
      %v609 = vpow.pop %v608
      %v610 = vadd.f32 %v609, 1.0
      %v611 = vrcp.pop %v610
      %v612 = vmul.f32 1.0, %v611
      %vm613 = vcmask 122880
      %614 = vst.msk [vmem:[%s280] sm:$0x1] %vm613, %v612
      %p615 = scmp.lt.s32.totalorder %s19, 1
      %s616 = scalar_select %p615, %s19, 1
      %s617 = scalar_lea.vmem %s7, %s616
      // Predicated region
      $region49: #{binary_regressor_forward.1} parent=47 // pred_check
        %p618 = pneg %p189
      $region50: #{binary_regressor_forward.1} parent=47 // pred_check_branch
        %620 = sbr.rel (%p618) target = $region52
      $region51: #{binary_regressor_forward.1} parent=47 // pred_region
        _
      $region52: #{binary_regressor_forward.1} parent=47 // pred_fallthru
        _
    $region48: #{binary_regressor_forward.1} parent=5 // pred_fallthru
      _
    %p621 = scmp.le.s32.totalorder 2, %s14
    // Predicated region
    $region53: #{binary_regressor_forward.1} parent=5 // pred_check
      %p622 = pneg %p621
    $region54: #{binary_regressor_forward.1} parent=5 // pred_check_branch
      %624 = sbr.rel (%p622) target = $region56
    $region55: #{binary_regressor_forward.1} parent=5 // pred_region
      %s625 = ssub.s32 %s14, 2
      // Predicated region
      $region57: #{binary_regressor_forward.1} parent=55 // pred_check
        %p626 = pneg %p195
      $region58: #{binary_regressor_forward.1} parent=55 // pred_check_branch
        %628 = sbr.rel (%p626) target = $region60
      $region59: #{binary_regressor_forward.1} parent=55 // pred_region
        %p629 = scmp.lt.s32.totalorder %s20, 1
        %s630 = scalar_select %p629, %s20, 1
        %s631 = scalar_lea.vmem %s7, %s630
      $region60: #{binary_regressor_forward.1} parent=55 // pred_fallthru
        _
    $region56: #{binary_regressor_forward.1} parent=5 // pred_fallthru
      _
  $region6: #{binary_regressor_forward.1} parent=0 // loop_footer
    %s18 = sadd.s32 1, %s14
  $region7: #{binary_regressor_forward.1} parent=0 // loop_footer_branch
    %13 = sbr.rel target = $region3
  $region8: #{binary_regressor_forward.1} parent=0 // loop_exit
    _

</llo_original>
